<compile_context>
chip_gen: v5e
topology: v5e:2x2
jax: 0.10.0
libtpu: 0.0.40
codegen_flags: <defaults>
</compile_context>

<pallas_src>
import functools

import jax
import jax.numpy as jnp
from jax.experimental import pallas as pl
from jax.experimental.pallas import tpu as pltpu


def _rup128(x):
    return pl.cdiv(x, 128) * 128


# --------------------------------------------------------------------------- kernel
def attention_gcn_kernel(x_ref, a_ref, w_ref, b_ref, out_ref, *,
                         nhid, HN, Cp, c_q, c_wf, c_w2, c_wlin, d_b2, d_bl):
    """Fused AttentionModel forward.

    x_ref : [N, R]  cdt  r|s node features, ones column (folds proj bias), zero pad
    a_ref : [N, N]  f32  symmetric-normalized dense adjacency (kept f32 for accuracy)
    w_ref : [R, Wc] cdt  packed weight slab (static, 128-aligned column regions)
    b_ref : [N, Bc] f32  packed per-node bias slab: b1_eff | b2 | b_lin_pad
    out   : [N, Cp] f32  log-softmax over the lane-padded classes
    """
    f32 = jnp.float32
    cdt = w_ref.dtype           # MXU operand dtype (f32 or bf16); accumulation is f32

    x = x_ref[...]              # [N, R]
    a = a_ref[...]              # [N, N] f32

    # ---- fused, head-tiled r/s projection (+bias via ones column): one matmul -------
    rs = jnp.tanh(jnp.dot(x, w_ref[:, pl.ds(0, 2 * HN)],
                          preferred_element_type=f32))                 # [N, 2*HN] f32
    r_tile = rs[:, :HN]                                                # 128-aligned slices
    s_tile = rs[:, HN:]

    # ---- per-head attention logits diff = r_alpha - s_alpha, replicated per head block
    # (slim [nhid, HN] Q matrices; only single copies of r and s are needed as LHS)
    r1 = rs[:, :nhid].astype(cdt)
    s1 = rs[:, HN:HN + nhid].astype(cdt)
    diff = (jnp.dot(r1, w_ref[pl.ds(0, nhid), pl.ds(c_q, HN)],
                    preferred_element_type=f32)
            + jnp.dot(s1, w_ref[pl.ds(nhid, nhid), pl.ds(c_q, HN)],    # holds -q_s
                      preferred_element_type=f32))                     # [N, HN] f32
    # sigmoid(r_a - s_a) == exp(r_a)/(exp(r_a)+exp(s_a)); EUP exp + approx vrcp
    r_w = pl.reciprocal(1.0 + jnp.exp(-diff), approx=True)
    fusion = s_tile + r_w * (r_tile - s_tile)                          # [N, HN] f32

    # ---- GCN layer 1 with att_fusion folded in: A @ (fusion @ (W_att@W1)) + b1_eff ---
    h = jnp.dot(fusion.astype(cdt), w_ref[pl.ds(0, HN), pl.ds(c_wf, nhid)],
                preferred_element_type=f32)                            # [N, nhid]
    h = jnp.tanh(jnp.dot(a, h, preferred_element_type=f32)
                 + b_ref[:, pl.ds(0, nhid)])
    # TODO(synk): F.dropout(training=self.training) is stochastic in training mode;
    #             eval-mode identity is used here (pltpu.prng_* would be needed otherwise).

    # ---- GCN layer 2 (A-aggregation kept f32) ----------------------------------------
    h = jnp.dot(h.astype(cdt), w_ref[pl.ds(0, nhid), pl.ds(c_w2, nhid)],
                preferred_element_type=f32)
    h = jnp.tanh(jnp.dot(a, h, preferred_element_type=f32)
                 + b_ref[:, pl.ds(d_b2, nhid)])

    # ---- classifier (lane-dense Cp columns; pad columns carry ~finfo.min bias) -------
    logits = (jnp.dot(h.astype(cdt), w_ref[pl.ds(0, nhid), pl.ds(c_wlin, Cp)],
                      preferred_element_type=f32)
              + b_ref[:, pl.ds(d_bl, Cp)])

    # log_softmax over dim=1 (lane-dense reduction; pad lanes contribute exp() == 0)
    m = jnp.max(logits, axis=1, keepdims=True)
    lse = jnp.log(jnp.sum(jnp.exp(logits - m), axis=1, keepdims=True)) + m
    out_ref[...] = logits - lse


# --------------------------------------------------------------------------- packing
def _pack_inputs(r_feats, s_feats, a_norm, params, compute_dtype):
    """Pre-pack everything into 4 operands: x_aug, A_norm, weight slab, bias slab."""
    f32 = jnp.float32
    N = r_feats.shape[0]
    heads = params["q_r"].shape[1]
    nhid = params["W1"].shape[0]
    r_dim = params["W_r"].shape[0]
    s_dim = params["W_s"].shape[0]
    C = params["b_lin"].shape[-1]
    HN = heads * nhid
    Cp = _rup128(C)
    # slab row count == padded feature width (shared K for the projection matmul)
    R = max(_rup128(r_dim + s_dim + 1), _rup128(HN), _rup128(2 * nhid))

    # --- node features padded to R lanes; ones column folds the projection bias ------
    x_aug = jnp.zeros((N, R), f32)
    x_aug = x_aug.at[:, :r_dim].set(r_feats)
    x_aug = x_aug.at[:, r_dim:r_dim + s_dim].set(s_feats)
    x_aug = x_aug.at[:, r_dim + s_dim].set(1.0)

    # --- packed weight slab (every column region starts 128-aligned) ------------------
    c_q = _rup128(2 * HN)
    c_wf = c_q + _rup128(HN)
    c_w2 = c_wf + _rup128(nhid)
    c_wlin = c_w2 + _rup128(nhid)
    Wc = c_wlin + Cp

    w = jnp.zeros((R, Wc), f32)
    # head-tiled block-diagonal projection + bias row: x_aug @ . == [r|..|r | s|..|s]
    w = w.at[:r_dim, :HN].set(jnp.tile(params["W_r"], (1, heads)))
    w = w.at[r_dim:r_dim + s_dim, HN:2 * HN].set(jnp.tile(params["W_s"], (1, heads)))
    w = w.at[r_dim + s_dim, :HN].set(jnp.tile(params["b_r"], (1, heads))[0])
    w = w.at[r_dim + s_dim, HN:2 * HN].set(jnp.tile(params["b_s"], (1, heads))[0])
    # slim attention-logit matrices (rows 0:nhid -> q_r replicated per head block,
    # rows nhid:2*nhid -> -q_s replicated; kernel accumulates the two small dots)
    w = w.at[:nhid, c_q:c_q + HN].set(jnp.repeat(params["q_r"], nhid, axis=1))
    w = w.at[nhid:2 * nhid, c_q:c_q + HN].set(-jnp.repeat(params["q_s"], nhid, axis=1))
    # att_fusion Linear folded into the first GCN weight (no nonlinearity between them)
    w = w.at[:HN, c_wf:c_wf + nhid].set(params["W_att"] @ params["W1"])
    w = w.at[:nhid, c_w2:c_w2 + nhid].set(params["W2"])
    w = w.at[:nhid, c_wlin:c_wlin + C].set(params["W_lin"])

    # --- packed per-node f32 bias slab: b1_eff | b2 | b_lin_pad ------------------------
    d_b2 = _rup128(nhid)
    d_bl = d_b2 + _rup128(nhid)
    Bc = d_bl + Cp

    # folded att_fusion bias: A @ (1 b_att W1) == rowsum(A)[:,None] * (b_att @ W1)
    b1_eff = (jnp.sum(a_norm, axis=1, keepdims=True) * (params["b_att"] @ params["W1"])
              + params["b1"])                                           # [N, nhid]
    pad_neg = float(jnp.finfo(jnp.float32).min) * 0.5                   # dtype-aware "-inf"
    b_lin_pad = jnp.full((1, Cp), pad_neg, f32).at[:, :C].set(params["b_lin"])

    b = jnp.zeros((N, Bc), f32)
    b = b.at[:, :nhid].set(b1_eff)
    b = b.at[:, d_b2:d_b2 + nhid].set(jnp.broadcast_to(params["b2"], (N, nhid)))
    b = b.at[:, d_bl:d_bl + Cp].set(jnp.broadcast_to(b_lin_pad, (N, Cp)))

    cdt = compute_dtype
    inputs = (x_aug.astype(cdt), a_norm.astype(f32), w.astype(cdt), b)
    layout = dict(nhid=nhid, HN=HN, Cp=Cp, c_q=c_q, c_wf=c_wf, c_w2=c_w2,
                  c_wlin=c_wlin, d_b2=d_b2, d_bl=d_bl)
    return inputs, layout, C


# --------------------------------------------------------------------------- wrapper
def attention_model_forward(r_feats, s_feats, a_norm, params,
                            compute_dtype=jnp.float32):
    """Single gridless pallas_call (whole problem fits VMEM at these sizes)."""
    N = r_feats.shape[0]
    inputs, layout, C = _pack_inputs(r_feats, s_feats, a_norm, params, compute_dtype)
    x_aug, a_f32, w_slab, b_slab = inputs
    nhid, HN, Cp = layout["nhid"], layout["HN"], layout["Cp"]
    R = x_aug.shape[1]

    # advisory cost estimate (matmuls counted at their padded kernel shapes)
    flops = 2 * N * (R * 2 * HN                 # fused r/s projection
                     + 2 * nhid * HN            # slim attention-logit dots
                     + HN * nhid + N * nhid     # GCN layer 1 (att_fusion folded)
                     + nhid * nhid + N * nhid   # GCN layer 2
                     + nhid * Cp)               # classifier
    transcendentals = N * (2 * HN + HN + 2 * nhid + Cp)
    in_bytes = sum(int(x.size) * x.dtype.itemsize for x in inputs)
    out_bytes = N * Cp * 4
    vmem_limit = int(min(100 * 1024 * 1024,
                         max(8 * 1024 * 1024, 4 * (in_bytes + out_bytes))))

    vmem = pl.BlockSpec(memory_space=pltpu.MemorySpace.VMEM)
    kernel = functools.partial(attention_gcn_kernel, **layout)
    out_pad = pl.pallas_call(
        kernel,
        out_shape=jax.ShapeDtypeStruct((N, Cp), jnp.float32),
        in_specs=[vmem] * len(inputs),
        out_specs=vmem,
        compiler_params=pltpu.CompilerParams(vmem_limit_bytes=vmem_limit),
        cost_estimate=pl.CostEstimate(flops=int(flops),
                                      transcendentals=int(transcendentals),
                                      bytes_accessed=int(in_bytes + out_bytes)),
    )(x_aug, a_f32, w_slab, b_slab)
    return out_pad[:, :C]


# --------------------------------------------------------------------------- reference
def reference_forward(r_feats, s_feats, a_norm, params):
    """Pure-JAX reference mirroring the PyTorch forward (eval mode), original structure."""
    r = jnp.tanh(r_feats @ params["W_r"] + params["b_r"])
    s = jnp.tanh(s_feats @ params["W_s"] + params["b_s"])
    r_alpha = r @ params["q_r"]
    s_alpha = s @ params["q_s"]
    er, es = jnp.exp(r_alpha), jnp.exp(s_alpha)
    denom = er + es
    r_w, s_w = er / denom, es / denom
    heads = r_w.shape[1]
    fusion = jnp.concatenate(
        [r_w[:, i:i + 1] * r + s_w[:, i:i + 1] * s for i in range(heads)], axis=1)
    x = fusion @ params["W_att"] + params["b_att"]
    x = jnp.tanh(a_norm @ (x @ params["W1"]) + params["b1"])
    x = jnp.tanh(a_norm @ (x @ params["W2"]) + params["b2"])
    logits = x @ params["W_lin"] + params["b_lin"]
    return jax.nn.log_softmax(logits, axis=1)


# --------------------------------------------------------------------------- setup
def make_params(key, r_dim, s_dim, nhid, heads, num_classes):
    ks = jax.random.split(key, 16)

    def lin(kw, kb, fan_in, fan_out):
        # torch Linear default init (uniform +-1/sqrt(fan_in)); stored as [in, out]
        bound = 1.0 / jnp.sqrt(fan_in)
        w = jax.random.uniform(kw, (fan_in, fan_out), jnp.float32, -bound, bound)
        b = jax.random.uniform(kb, (1, fan_out), jnp.float32, -bound, bound)
        return w, b

    W_r, b_r = lin(ks[0], ks[1], r_dim, nhid)
    W_s, b_s = lin(ks[2], ks[3], s_dim, nhid)
    W_att, b_att = lin(ks[4], ks[5], heads * nhid, nhid)
    W1, b1 = lin(ks[6], ks[7], nhid, nhid)
    W2, b2 = lin(ks[8], ks[9], nhid, nhid)
    W_lin, b_lin = lin(ks[10], ks[11], nhid, num_classes)
    q_r = jax.random.uniform(ks[12], (nhid, heads), jnp.float32)   # torch.rand
    q_s = jax.random.uniform(ks[13], (nhid, heads), jnp.float32)
    return dict(W_r=W_r, b_r=b_r, q_r=q_r, W_s=W_s, b_s=b_s, q_s=q_s,
                W_att=W_att, b_att=b_att, W1=W1, b1=b1, W2=W2, b2=b2,
                W_lin=W_lin, b_lin=b_lin)


def make_norm_adj(n):
    # ring graph + self loops, symmetric normalization D^-1/2 (A+I) D^-1/2
    idx = jnp.arange(n)
    A = jnp.zeros((n, n), jnp.float32)
    A = A.at[idx, (idx + 1) % n].set(1.0)
    A = A.at[(idx + 1) % n, idx].set(1.0)
    A = A + jnp.eye(n, dtype=jnp.float32)
    d = jnp.sum(A, axis=1)
    d_inv_sqrt = 1.0 / jnp.sqrt(d)
    return A * d_inv_sqrt[:, None] * d_inv_sqrt[None, :]


if __name__ == "__main__":
    N, R_DIM, S_DIM, NHID, HEADS, NUM_CLASSES = 64, 16, 12, 32, 4, 8

    key = jax.random.PRNGKey(0)
    k_r, k_s, k_p = jax.random.split(key, 3)
    r_feats = jax.random.normal(k_r, (N, R_DIM), jnp.float32)
    s_feats = jax.random.normal(k_s, (N, S_DIM), jnp.float32)
    params = make_params(k_p, R_DIM, S_DIM, NHID, HEADS, NUM_CLASSES)
    a_norm = make_norm_adj(N)

    ref = reference_forward(r_feats, s_feats, a_norm, params)

    # f32 operands (default; best choice on v5e).  Tolerance accounts for the EUP
    # approx-reciprocal in the attention gate (dominant, still small, error source).
    out = attention_model_forward(r_feats, s_feats, a_norm, params,
                                  compute_dtype=jnp.float32)
    out = jax.block_until_ready(out)
    assert out.shape == (N, NUM_CLASSES)
    assert jnp.allclose(out, ref, atol=5e-3, rtol=5e-3), "f32 kernel mismatch vs reference"

    # bf16 MXU operands, f32 accumulation + f32 A-aggregation (v6e/v7x throughput path)
    out_bf16 = attention_model_forward(r_feats, s_feats, a_norm, params,
                                       compute_dtype=jnp.bfloat16)
    out_bf16 = jax.block_until_ready(out_bf16)
    assert out_bf16.shape == (N, NUM_CLASSES)
    assert bool(jnp.all(jnp.isfinite(out_bf16)))
    assert float(jnp.max(jnp.abs(out_bf16 - ref))) < 0.25, "bf16 kernel diverged"

    print("KERNEL_OK")
</pallas_src>

<mosaic_0001>
module attributes {stable_mosaic.version = 11 : i64} {
  func.func @attention_gcn_kernel(%arg0: memref<64x128xf32, #tpu.memory_space<vmem>>, %arg1: memref<64x64xf32, #tpu.memory_space<vmem>>, %arg2: memref<128x768xf32, #tpu.memory_space<vmem>>, %arg3: memref<64x384xf32, #tpu.memory_space<vmem>>, %arg4: memref<64x128xf32, #tpu.memory_space<vmem>>) attributes {dimension_semantics = [], scalar_prefetch = 0 : i64, scratch_operands = 0 : i64, tpu.core_type = #tpu.core_type<tc>} {
    %c0 = arith.constant 0 : index
    %c0_0 = arith.constant 0 : index
    %0 = vector.load %arg0[%c0, %c0_0] : memref<64x128xf32, #tpu.memory_space<vmem>>, vector<64x128xf32>
    %c0_1 = arith.constant 0 : index
    %c0_2 = arith.constant 0 : index
    %1 = vector.load %arg1[%c0_1, %c0_2] : memref<64x64xf32, #tpu.memory_space<vmem>>, vector<64x64xf32>
    %c0_3 = arith.constant 0 : index
    %c0_4 = arith.constant 0 : index
    %2 = vector.load %arg2[%c0_3, %c0_4] : memref<128x768xf32, #tpu.memory_space<vmem>>, vector<128x256xf32>
    %cst = arith.constant dense<0.000000e+00> : vector<64x256xf32>
    %3 = tpu.matmul %0, %2, %cst {dimension_numbers = #tpu.dot_dimension_numbers<[1], [0], [0], [1], [0, 0, 1, 1], [], []>} : vector<64x128xf32>, vector<128x256xf32>, vector<64x256xf32> -> vector<64x256xf32>
    %4 = math.tanh %3 : vector<64x256xf32>
    %5 = vector.extract_strided_slice %4 {offsets = [0, 0], sizes = [64, 128], strides = [1, 1]} : vector<64x256xf32> to vector<64x128xf32>
    %6 = vector.extract_strided_slice %4 {offsets = [0, 128], sizes = [64, 128], strides = [1, 1]} : vector<64x256xf32> to vector<64x128xf32>
    %7 = vector.extract_strided_slice %4 {offsets = [0, 0], sizes = [64, 32], strides = [1, 1]} : vector<64x256xf32> to vector<64x32xf32>
    %8 = vector.extract_strided_slice %4 {offsets = [0, 128], sizes = [64, 32], strides = [1, 1]} : vector<64x256xf32> to vector<64x32xf32>
    %c0_5 = arith.constant 0 : index
    %c256 = arith.constant 256 : index
    %9 = vector.load %arg2[%c0_5, %c256] : memref<128x768xf32, #tpu.memory_space<vmem>>, vector<32x128xf32>
    %cst_6 = arith.constant dense<0.000000e+00> : vector<64x128xf32>
    %10 = tpu.matmul %7, %9, %cst_6 {dimension_numbers = #tpu.dot_dimension_numbers<[1], [0], [0], [1], [0, 0, 1, 1], [], []>} : vector<64x32xf32>, vector<32x128xf32>, vector<64x128xf32> -> vector<64x128xf32>
    %c32 = arith.constant 32 : index
    %c256_7 = arith.constant 256 : index
    %11 = vector.load %arg2[%c32, %c256_7] : memref<128x768xf32, #tpu.memory_space<vmem>>, vector<32x128xf32>
    %cst_8 = arith.constant dense<0.000000e+00> : vector<64x128xf32>
    %12 = tpu.matmul %8, %11, %cst_8 {dimension_numbers = #tpu.dot_dimension_numbers<[1], [0], [0], [1], [0, 0, 1, 1], [], []>} : vector<64x32xf32>, vector<32x128xf32>, vector<64x128xf32> -> vector<64x128xf32>
    %13 = arith.addf %10, %12 : vector<64x128xf32>
    %cst_9 = arith.constant 0.000000e+00 : f32
    %14 = vector.broadcast %cst_9 : f32 to vector<64x128xf32>
    %15 = arith.subf %14, %13 : vector<64x128xf32>
    %16 = math.exp %15 : vector<64x128xf32>
    %cst_10 = arith.constant 1.000000e+00 : f32
    %17 = vector.broadcast %cst_10 : f32 to vector<64x128xf32>
    %18 = arith.addf %17, %16 : vector<64x128xf32>
    %19 = tpu.reciprocal %18 {approx = true} : vector<64x128xf32> -> vector<64x128xf32>
    %20 = arith.subf %5, %6 : vector<64x128xf32>
    %21 = arith.mulf %19, %20 : vector<64x128xf32>
    %22 = arith.addf %6, %21 : vector<64x128xf32>
    %c0_11 = arith.constant 0 : index
    %c384 = arith.constant 384 : index
    %23 = vector.load %arg2[%c0_11, %c384] : memref<128x768xf32, #tpu.memory_space<vmem>>, vector<128x32xf32>
    %cst_12 = arith.constant dense<0.000000e+00> : vector<64x32xf32>
    %24 = tpu.matmul %22, %23, %cst_12 {dimension_numbers = #tpu.dot_dimension_numbers<[1], [0], [0], [1], [0, 0, 1, 1], [], []>} : vector<64x128xf32>, vector<128x32xf32>, vector<64x32xf32> -> vector<64x32xf32>
    %cst_13 = arith.constant dense<0.000000e+00> : vector<64x32xf32>
    %25 = tpu.matmul %1, %24, %cst_13 {dimension_numbers = #tpu.dot_dimension_numbers<[1], [0], [0], [1], [0, 0, 1, 1], [], []>} : vector<64x64xf32>, vector<64x32xf32>, vector<64x32xf32> -> vector<64x32xf32>
    %c0_14 = arith.constant 0 : index
    %c0_15 = arith.constant 0 : index
    %26 = vector.load %arg3[%c0_14, %c0_15] : memref<64x384xf32, #tpu.memory_space<vmem>>, vector<64x32xf32>
    %27 = arith.addf %25, %26 : vector<64x32xf32>
    %28 = math.tanh %27 : vector<64x32xf32>
    %c0_16 = arith.constant 0 : index
    %c512 = arith.constant 512 : index
    %29 = vector.load %arg2[%c0_16, %c512] : memref<128x768xf32, #tpu.memory_space<vmem>>, vector<32x32xf32>
    %cst_17 = arith.constant dense<0.000000e+00> : vector<64x32xf32>
    %30 = tpu.matmul %28, %29, %cst_17 {dimension_numbers = #tpu.dot_dimension_numbers<[1], [0], [0], [1], [0, 0, 1, 1], [], []>} : vector<64x32xf32>, vector<32x32xf32>, vector<64x32xf32> -> vector<64x32xf32>
    %cst_18 = arith.constant dense<0.000000e+00> : vector<64x32xf32>
    %31 = tpu.matmul %1, %30, %cst_18 {dimension_numbers = #tpu.dot_dimension_numbers<[1], [0], [0], [1], [0, 0, 1, 1], [], []>} : vector<64x64xf32>, vector<64x32xf32>, vector<64x32xf32> -> vector<64x32xf32>
    %c0_19 = arith.constant 0 : index
    %c128 = arith.constant 128 : index
    %32 = vector.load %arg3[%c0_19, %c128] : memref<64x384xf32, #tpu.memory_space<vmem>>, vector<64x32xf32>
    %33 = arith.addf %31, %32 : vector<64x32xf32>
    %34 = math.tanh %33 : vector<64x32xf32>
    %c0_20 = arith.constant 0 : index
    %c640 = arith.constant 640 : index
    %35 = vector.load %arg2[%c0_20, %c640] : memref<128x768xf32, #tpu.memory_space<vmem>>, vector<32x128xf32>
    %cst_21 = arith.constant dense<0.000000e+00> : vector<64x128xf32>
    %36 = tpu.matmul %34, %35, %cst_21 {dimension_numbers = #tpu.dot_dimension_numbers<[1], [0], [0], [1], [0, 0, 1, 1], [], []>} : vector<64x32xf32>, vector<32x128xf32>, vector<64x128xf32> -> vector<64x128xf32>
    %c0_22 = arith.constant 0 : index
    %c256_23 = arith.constant 256 : index
    %37 = vector.load %arg3[%c0_22, %c256_23] : memref<64x384xf32, #tpu.memory_space<vmem>>, vector<64x128xf32>
    %38 = arith.addf %36, %37 : vector<64x128xf32>
    %cst_24 = arith.constant dense<0xFF800000> : vector<64xf32>
    %39 = vector.multi_reduction <maximumf>, %38, %cst_24 [1] : vector<64x128xf32> to vector<64xf32>
    %40 = vector.shape_cast %39 : vector<64xf32> to vector<64x1xf32>
    %41 = vector.broadcast %40 : vector<64x1xf32> to vector<64x128xf32>
    %42 = arith.subf %38, %41 : vector<64x128xf32>
    %43 = math.exp %42 : vector<64x128xf32>
    %cst_25 = arith.constant dense<0.000000e+00> : vector<64xf32>
    %44 = vector.multi_reduction <add>, %43, %cst_25 [1] : vector<64x128xf32> to vector<64xf32>
    %45 = vector.shape_cast %44 : vector<64xf32> to vector<64x1xf32>
    %46 = math.log %45 : vector<64x1xf32>
    %47 = arith.addf %46, %40 : vector<64x1xf32>
    %48 = vector.broadcast %47 : vector<64x1xf32> to vector<64x128xf32>
    %49 = arith.subf %38, %48 : vector<64x128xf32>
    %c0_26 = arith.constant 0 : index
    %c0_27 = arith.constant 0 : index
    %50 = vector.load %arg4[%c0_26, %c0_27] : memref<64x128xf32, #tpu.memory_space<vmem>>, vector<64x128xf32>
    tpu.vector_store %arg4[%c0_26, %c0_27], %49 {strides = array<i32>} : memref<64x128xf32, #tpu.memory_space<vmem>>, vector<64x128xf32>,
    return
  }
}

</mosaic_0001>

<llo_original>
// kernel: tpu_custom_call.1
$region0: #{tpu_custom_call.1}
  #allocation0 [shape = 'u32[]', space=smem, size = 0x4, offset = 0x4, fixed_abs, tag = 'smem constant byte address 0x4 - core index']
  #allocation1 [shape = 'u32[72,128]{1,0:T(1,128)}', space=vmem, size = 0x9000, scoped, tag = 'internal scratch']
  %s0 = inlined_call_operand.hbm [shape: f32[64,128], index: 0, kind: input, shape index: {}]
  %s1 = inlined_call_operand.hbm [shape: f32[64,64], index: 1, kind: input, shape index: {}]
  %s2 = inlined_call_operand.hbm [shape: f32[128,768], index: 2, kind: input, shape index: {}]
  %s3 = inlined_call_operand.hbm [shape: f32[64,384], index: 3, kind: input, shape index: {}]
  %s4 = inlined_call_operand.hbm [shape: f32[64,128], index: 4, kind: output, shape index: {}]
  %s5 = sld [smem:[#allocation0]]
  $region42: #{tpu_custom_call.1} parent=0
    _
  %s7 = ssub.s32 1, %s5
  %s8 = scalar_select 0, %s7, %s5
  $region1: #{tpu_custom_call.1} parent=0
    #allocation2 [shape = 'u8[32768]{0}', space=vmem, size = 0x8000, scoped, tag = 'input window, operand 0, single buffered']
    #allocation3 [shape = 's32[1]{0}', space=sflag, size = 0x4, scoped, tag = 'scoped memory for tpu_custom_call.1']
    #allocation4 [shape = 's32[1]{0}', space=sflag, size = 0x4, scoped, tag = 'scoped memory for tpu_custom_call.1']
    #allocation5 [shape = 'u8[32768]{0}', space=vmem, size = 0x8000, scoped, tag = 'input window, operand 1, single buffered']
    #allocation6 [shape = 's32[1]{0}', space=sflag, size = 0x4, scoped, tag = 'scoped memory for tpu_custom_call.1']
    #allocation7 [shape = 'u8[393216]{0}', space=vmem, size = 0x60000, scoped, tag = 'input window, operand 2, single buffered']
    #allocation8 [shape = 'u8[98304]{0}', space=vmem, size = 0x18000, scoped, tag = 'input window, operand 3, single buffered']
    #allocation9 [shape = 's32[1]{0}', space=sflag, size = 0x4, scoped, tag = 'scoped memory for tpu_custom_call.1']
    #allocation10 [shape = 'u8[32768]{0}', space=vmem, size = 0x8000, scoped, tag = 'output window, operand 0, single buffered']
    %9 = vsyncpa [#allocation3], 0
    %10 = vsyncpa [#allocation6], 0
    %11 = vsyncpa [#allocation9], 0
    %12 = vsyncpa [#allocation4], 0
    // Predicated region
    $region2: #{tpu_custom_call.1} parent=1 // pred_check
      _
    $region3: #{tpu_custom_call.1} parent=1 // pred_check_branch
      %14 = sbr.rel (0) target = $region5
    $region4: #{tpu_custom_call.1} parent=1 // pred_region
      %16 = vsyncadd [#allocation3], 0
      %s17 = sshll.u32 %s0, 4
      %s18 = int_to_ptr.hbm [resolvable:$true] %s17
      %s19 = sshll.u32 [#allocation2], 4
      %s20 = int_to_ptr.vmem [resolvable:$true] %s19
      %25 = dma.hbm_to_vmem [thread:$0]  %s18, 1024, %s20, [#allocation3], 128, 128, 8
    $region5: #{tpu_custom_call.1} parent=1 // pred_fallthru
      _
    // Predicated region
    $region6: #{tpu_custom_call.1} parent=1 // pred_check
      _
    $region7: #{tpu_custom_call.1} parent=1 // pred_check_branch
      %27 = sbr.rel (0) target = $region9
    $region8: #{tpu_custom_call.1} parent=1 // pred_region
      %29 = vsyncadd [#allocation6], 0
      %s30 = sshll.u32 %s1, 4
      %s31 = int_to_ptr.hbm [resolvable:$true] %s30
      %s32 = sshll.u32 [#allocation5], 4
      %s33 = int_to_ptr.vmem [resolvable:$true] %s32
      %38 = dma.hbm_to_vmem [thread:$0]  %s31, 1024, %s33, [#allocation6], 128, 128, 8
    $region9: #{tpu_custom_call.1} parent=1 // pred_fallthru
      _
    // Predicated region
    $region10: #{tpu_custom_call.1} parent=1 // pred_check
      _
    $region11: #{tpu_custom_call.1} parent=1 // pred_check_branch
      %40 = sbr.rel (0) target = $region13
    $region12: #{tpu_custom_call.1} parent=1 // pred_region
      %42 = vsyncadd [#allocation6], 0
      %s43 = sshll.u32 %s2, 4
      %s44 = int_to_ptr.hbm [resolvable:$true] %s43
      %s45 = sshll.u32 [#allocation7], 4
      %s46 = int_to_ptr.vmem [resolvable:$true] %s45
      %51 = dma.hbm_to_vmem [thread:$0]  %s44, 12288, %s46, [#allocation6], 768, 768, 48
    $region13: #{tpu_custom_call.1} parent=1 // pred_fallthru
      _
    // Predicated region
    $region14: #{tpu_custom_call.1} parent=1 // pred_check
      _
    $region15: #{tpu_custom_call.1} parent=1 // pred_check_branch
      %53 = sbr.rel (0) target = $region17
    $region16: #{tpu_custom_call.1} parent=1 // pred_region
      %55 = vsyncadd [#allocation9], 0
      %s56 = sshll.u32 %s3, 4
      %s57 = int_to_ptr.hbm [resolvable:$true] %s56
      %s58 = sshll.u32 [#allocation8], 4
      %s59 = int_to_ptr.vmem [resolvable:$true] %s58
      %64 = dma.hbm_to_vmem [thread:$0]  %s57, 3072, %s59, [#allocation9], 384, 384, 24
    $region17: #{tpu_custom_call.1} parent=1 // pred_fallthru
      _
    // Predicated region
    $region18: #{tpu_custom_call.1} parent=1 // pred_check
      _
    $region19: #{tpu_custom_call.1} parent=1 // pred_check_branch
      %66 = sbr.rel (0) target = $region21
    $region20: #{tpu_custom_call.1} parent=1 // pred_region
      %68 = dma.done [#allocation3], 1024
    $region21: #{tpu_custom_call.1} parent=1 // pred_fallthru
      _
    // Predicated region
    $region22: #{tpu_custom_call.1} parent=1 // pred_check
      _
    $region23: #{tpu_custom_call.1} parent=1 // pred_check_branch
      %70 = sbr.rel (0) target = $region25
    $region24: #{tpu_custom_call.1} parent=1 // pred_region
      %72 = dma.done [#allocation6], 1024
    $region25: #{tpu_custom_call.1} parent=1 // pred_fallthru
      _
    // Predicated region
    $region26: #{tpu_custom_call.1} parent=1 // pred_check
      _
    $region27: #{tpu_custom_call.1} parent=1 // pred_check_branch
      %74 = sbr.rel (0) target = $region29
    $region28: #{tpu_custom_call.1} parent=1 // pred_region
      %76 = dma.done [#allocation6], 12288
    $region29: #{tpu_custom_call.1} parent=1 // pred_fallthru
      _
    // Predicated region
    $region30: #{tpu_custom_call.1} parent=1 // pred_check
      _
    $region31: #{tpu_custom_call.1} parent=1 // pred_check_branch
      %78 = sbr.rel (0) target = $region33
    $region32: #{tpu_custom_call.1} parent=1 // pred_region
      %80 = dma.done [#allocation9], 3072
    $region33: #{tpu_custom_call.1} parent=1 // pred_fallthru
      _
    %v81 = vld [vmem:[#allocation2] sm:$0xff]
    %v82 = vld [vmem:[#allocation2 + $0x8] sm:$0xff]
    %v83 = vld [vmem:[#allocation2 + $0x10] sm:$0xff]
    %v84 = vld [vmem:[#allocation2 + $0x18] sm:$0xff]
    %v85 = vld [vmem:[#allocation2 + $0x20] sm:$0xff]
    %v86 = vld [vmem:[#allocation2 + $0x28] sm:$0xff]
    %v87 = vld [vmem:[#allocation2 + $0x30] sm:$0xff]
    %v88 = vld [vmem:[#allocation2 + $0x38] sm:$0xff]
    %v89 = vld [vmem:[#allocation5] sm:$0xff]
    %v90 = vld [vmem:[#allocation5 + $0x8] sm:$0xff]
    %v91 = vld [vmem:[#allocation5 + $0x10] sm:$0xff]
    %v92 = vld [vmem:[#allocation5 + $0x18] sm:$0xff]
    %v93 = vld [vmem:[#allocation5 + $0x20] sm:$0xff]
    %v94 = vld [vmem:[#allocation5 + $0x28] sm:$0xff]
    %v95 = vld [vmem:[#allocation5 + $0x30] sm:$0xff]
    %v96 = vld [vmem:[#allocation5 + $0x38] sm:$0xff]
    %v97 = vld [vmem:[#allocation7] sm:$0xff]
    %v98 = vld [vmem:[#allocation7 + $0x8] sm:$0xff]
    %v99 = vld [vmem:[#allocation7 + $0x30] sm:$0xff]
    %v100 = vld [vmem:[#allocation7 + $0x38] sm:$0xff]
    %v101 = vld [vmem:[#allocation7 + $0x60] sm:$0xff]
    %v102 = vld [vmem:[#allocation7 + $0x68] sm:$0xff]
    %v103 = vld [vmem:[#allocation7 + $0x90] sm:$0xff]
    %v104 = vld [vmem:[#allocation7 + $0x98] sm:$0xff]
    %v105 = vld [vmem:[#allocation7 + $0xc0] sm:$0xff]
    %v106 = vld [vmem:[#allocation7 + $0xc8] sm:$0xff]
    %v107 = vld [vmem:[#allocation7 + $0xf0] sm:$0xff]
    %v108 = vld [vmem:[#allocation7 + $0xf8] sm:$0xff]
    %v109 = vld [vmem:[#allocation7 + $0x120] sm:$0xff]
    %v110 = vld [vmem:[#allocation7 + $0x128] sm:$0xff]
    %v111 = vld [vmem:[#allocation7 + $0x150] sm:$0xff]
    %v112 = vld [vmem:[#allocation7 + $0x158] sm:$0xff]
    %v113 = vld [vmem:[#allocation7 + $0x180] sm:$0xff]
    %v114 = vld [vmem:[#allocation7 + $0x188] sm:$0xff]
    %v115 = vld [vmem:[#allocation7 + $0x1b0] sm:$0xff]
    %v116 = vld [vmem:[#allocation7 + $0x1b8] sm:$0xff]
    %v117 = vld [vmem:[#allocation7 + $0x1e0] sm:$0xff]
    %v118 = vld [vmem:[#allocation7 + $0x1e8] sm:$0xff]
    %v119 = vld [vmem:[#allocation7 + $0x210] sm:$0xff]
    %v120 = vld [vmem:[#allocation7 + $0x218] sm:$0xff]
    %v121 = vld [vmem:[#allocation7 + $0x240] sm:$0xff]
    %v122 = vld [vmem:[#allocation7 + $0x248] sm:$0xff]
    %v123 = vld [vmem:[#allocation7 + $0x270] sm:$0xff]
    %v124 = vld [vmem:[#allocation7 + $0x278] sm:$0xff]
    %v125 = vld [vmem:[#allocation7 + $0x2a0] sm:$0xff]
    %v126 = vld [vmem:[#allocation7 + $0x2a8] sm:$0xff]
    %v127 = vld [vmem:[#allocation7 + $0x2d0] sm:$0xff]
    %v128 = vld [vmem:[#allocation7 + $0x2d8] sm:$0xff]
    %129 = vmatpush.msra.mxu0 %v127
    %130 = vmatpush.msra.mxu0 %v125
    %131 = vmatpush.msra.mxu0 %v123
    %132 = vmatpush.msra.mxu0 %v121
    %133 = vmatpush.msra.mxu0 %v119
    %134 = vmatpush.msra.mxu0 %v117
    %135 = vmatpush.msra.mxu0 %v115
    %136 = vmatpush.msra.mxu0 %v113
    %137 = vmatpush.msra.mxu0 %v111
    %138 = vmatpush.msra.mxu0 %v109
    %139 = vmatpush.msra.mxu0 %v107
    %140 = vmatpush.msra.mxu0 %v105
    %141 = vmatpush.msra.mxu0 %v103
    %142 = vmatpush.msra.mxu0 %v101
    %143 = vmatpush.msra.mxu0 %v99
    %144 = vmatpush.msra.mxu0 %v97
    %145 = vmatmul.f32.gmra.mxu0 %v81
    %v146 = vpop.f32.mrf.mxu0
    %v147 = vadd.f32 0.0, %v146
    %148 = vmatmul.f32.gmra.mxu0 %v82
    %v149 = vpop.f32.mrf.mxu0
    %v150 = vadd.f32 0.0, %v149
    %151 = vmatmul.f32.gmra.mxu0 %v83
    %v152 = vpop.f32.mrf.mxu0
    %v153 = vadd.f32 0.0, %v152
    %154 = vmatmul.f32.gmra.mxu0 %v84
    %v155 = vpop.f32.mrf.mxu0
    %v156 = vadd.f32 0.0, %v155
    %157 = vmatmul.f32.gmra.mxu0 %v85
    %v158 = vpop.f32.mrf.mxu0
    %v159 = vadd.f32 0.0, %v158
    %160 = vmatmul.f32.gmra.mxu0 %v86
    %v161 = vpop.f32.mrf.mxu0
    %v162 = vadd.f32 0.0, %v161
    %163 = vmatmul.f32.gmra.mxu0 %v87
    %v164 = vpop.f32.mrf.mxu0
    %v165 = vadd.f32 0.0, %v164
    %166 = vmatmul.f32.gmra.mxu0 %v88
    %v167 = vpop.f32.mrf.mxu0
    %v168 = vadd.f32 0.0, %v167
    %169 = vdwg.mxu0
    %170 = vmatpush.msra.mxu0 %v128
    %171 = vmatpush.msra.mxu0 %v126
    %172 = vmatpush.msra.mxu0 %v124
    %173 = vmatpush.msra.mxu0 %v122
    %174 = vmatpush.msra.mxu0 %v120
    %175 = vmatpush.msra.mxu0 %v118
    %176 = vmatpush.msra.mxu0 %v116
    %177 = vmatpush.msra.mxu0 %v114
    %178 = vmatpush.msra.mxu0 %v112
    %179 = vmatpush.msra.mxu0 %v110
    %180 = vmatpush.msra.mxu0 %v108
    %181 = vmatpush.msra.mxu0 %v106
    %182 = vmatpush.msra.mxu0 %v104
    %183 = vmatpush.msra.mxu0 %v102
    %184 = vmatpush.msra.mxu0 %v100
    %185 = vmatpush.msra.mxu0 %v98
    %186 = vmatmul.f32.gmra.mxu0 %v81
    %v187 = vpop.f32.mrf.mxu0
    %v188 = vadd.f32 0.0, %v187
    %189 = vmatmul.f32.gmra.mxu0 %v82
    %v190 = vpop.f32.mrf.mxu0
    %v191 = vadd.f32 0.0, %v190
    %192 = vmatmul.f32.gmra.mxu0 %v83
    %v193 = vpop.f32.mrf.mxu0
    %v194 = vadd.f32 0.0, %v193
    %195 = vmatmul.f32.gmra.mxu0 %v84
    %v196 = vpop.f32.mrf.mxu0
    %v197 = vadd.f32 0.0, %v196
    %198 = vmatmul.f32.gmra.mxu0 %v85
    %v199 = vpop.f32.mrf.mxu0
    %v200 = vadd.f32 0.0, %v199
    %201 = vmatmul.f32.gmra.mxu0 %v86
    %v202 = vpop.f32.mrf.mxu0
    %v203 = vadd.f32 0.0, %v202
    %204 = vmatmul.f32.gmra.mxu0 %v87
    %v205 = vpop.f32.mrf.mxu0
    %v206 = vadd.f32 0.0, %v205
    %207 = vmatmul.f32.gmra.mxu0 %v88
    %v208 = vpop.f32.mrf.mxu0
    %v209 = vadd.f32 0.0, %v208
    %210 = vdwg.mxu0
    %v211 = vtanh.pop %v147
    %v212 = vtanh.pop %v188
    %v213 = vtanh.pop %v150
    %v214 = vtanh.pop %v191
    %v215 = vtanh.pop %v153
    %v216 = vtanh.pop %v194
    %v217 = vtanh.pop %v156
    %v218 = vtanh.pop %v197
    %v219 = vtanh.pop %v159
    %v220 = vtanh.pop %v200
    %v221 = vtanh.pop %v162
    %v222 = vtanh.pop %v203
    %v223 = vtanh.pop %v165
    %v224 = vtanh.pop %v206
    %v225 = vtanh.pop %v168
    %v226 = vtanh.pop %v209
    %v227 = vld [vmem:[#allocation7 + $0x10] sm:$0xff]
    %v228 = vld [vmem:[#allocation7 + $0x40] sm:$0xff]
    %v229 = vld [vmem:[#allocation7 + $0x70] sm:$0xff]
    %v230 = vld [vmem:[#allocation7 + $0xa0] sm:$0xff]
    %v231 = vld [vmem:[#allocation7 + $0xd0] sm:$0xff]
    %v232 = vld [vmem:[#allocation7 + $0x100] sm:$0xff]
    %v233 = vld [vmem:[#allocation7 + $0x130] sm:$0xff]
    %v234 = vld [vmem:[#allocation7 + $0x160] sm:$0xff]
    %vm235 = vcmask 261120
    %v237 = vsel %vm235, %v212, 0
    %v240 = vsel %vm235, %v214, 0
    %v243 = vsel %vm235, %v216, 0
    %v246 = vsel %vm235, %v218, 0
    %v249 = vsel %vm235, %v220, 0
    %v252 = vsel %vm235, %v222, 0
    %v255 = vsel %vm235, %v224, 0
    %v258 = vsel %vm235, %v226, 0
    %260 = vmatpush.msra.mxu0 0.0
    %261 = vmatpush.msra.mxu0 0.0
    %262 = vmatpush.msra.mxu0 0.0
    %263 = vmatpush.msra.mxu0 0.0
    %264 = vmatpush.msra.mxu0 0.0
    %265 = vmatpush.msra.mxu0 0.0
    %266 = vmatpush.msra.mxu0 0.0
    %267 = vmatpush.msra.mxu0 0.0
    %268 = vmatpush.msra.mxu0 0.0
    %269 = vmatpush.msra.mxu0 0.0
    %270 = vmatpush.msra.mxu0 0.0
    %271 = vmatpush.msra.mxu0 0.0
    %272 = vmatpush.msra.mxu0 %v234
    %273 = vmatpush.msra.mxu0 %v233
    %274 = vmatpush.msra.mxu0 %v232
    %275 = vmatpush.msra.mxu0 %v231
    %276 = vmatmul.f32.gmra.mxu0 %v237
    %v277 = vpop.f32.mrf.mxu0
    %v278 = vadd.f32 0.0, %v277
    %279 = vmatmul.f32.gmra.mxu0 %v240
    %v280 = vpop.f32.mrf.mxu0
    %v281 = vadd.f32 0.0, %v280
    %282 = vmatmul.f32.gmra.mxu0 %v243
    %v283 = vpop.f32.mrf.mxu0
    %v284 = vadd.f32 0.0, %v283
    %285 = vmatmul.f32.gmra.mxu0 %v246
    %v286 = vpop.f32.mrf.mxu0
    %v287 = vadd.f32 0.0, %v286
    %288 = vmatmul.f32.gmra.mxu0 %v249
    %v289 = vpop.f32.mrf.mxu0
    %v290 = vadd.f32 0.0, %v289
    %291 = vmatmul.f32.gmra.mxu0 %v252
    %v292 = vpop.f32.mrf.mxu0
    %v293 = vadd.f32 0.0, %v292
    %294 = vmatmul.f32.gmra.mxu0 %v255
    %v295 = vpop.f32.mrf.mxu0
    %v296 = vadd.f32 0.0, %v295
    %297 = vmatmul.f32.gmra.mxu0 %v258
    %v298 = vpop.f32.mrf.mxu0
    %v299 = vadd.f32 0.0, %v298
    %300 = vdwg.mxu0
    %v302 = vsel %vm235, %v211, 0
    %v305 = vsel %vm235, %v213, 0
    %v308 = vsel %vm235, %v215, 0
    %v311 = vsel %vm235, %v217, 0
    %v314 = vsel %vm235, %v219, 0
    %v317 = vsel %vm235, %v221, 0
    %v320 = vsel %vm235, %v223, 0
    %v323 = vsel %vm235, %v225, 0
    %325 = vmatpush.msra.mxu0 0.0
    %326 = vmatpush.msra.mxu0 0.0
    %327 = vmatpush.msra.mxu0 0.0
    %328 = vmatpush.msra.mxu0 0.0
    %329 = vmatpush.msra.mxu0 0.0
    %330 = vmatpush.msra.mxu0 0.0
    %331 = vmatpush.msra.mxu0 0.0
    %332 = vmatpush.msra.mxu0 0.0
    %333 = vmatpush.msra.mxu0 0.0
    %334 = vmatpush.msra.mxu0 0.0
    %335 = vmatpush.msra.mxu0 0.0
    %336 = vmatpush.msra.mxu0 0.0
    %337 = vmatpush.msra.mxu0 %v230
    %338 = vmatpush.msra.mxu0 %v229
    %339 = vmatpush.msra.mxu0 %v228
    %340 = vmatpush.msra.mxu0 %v227
    %341 = vmatmul.f32.gmra.mxu0 %v302
    %v342 = vpop.f32.mrf.mxu0
    %v343 = vadd.f32 %v278, %v342
    %344 = vmatmul.f32.gmra.mxu0 %v305
    %v345 = vpop.f32.mrf.mxu0
    %v346 = vadd.f32 %v281, %v345
    %347 = vmatmul.f32.gmra.mxu0 %v308
    %v348 = vpop.f32.mrf.mxu0
    %v349 = vadd.f32 %v284, %v348
    %350 = vmatmul.f32.gmra.mxu0 %v311
    %v351 = vpop.f32.mrf.mxu0
    %v352 = vadd.f32 %v287, %v351
    %353 = vmatmul.f32.gmra.mxu0 %v314
    %v354 = vpop.f32.mrf.mxu0
    %v355 = vadd.f32 %v290, %v354
    %356 = vmatmul.f32.gmra.mxu0 %v317
    %v357 = vpop.f32.mrf.mxu0
    %v358 = vadd.f32 %v293, %v357
    %359 = vmatmul.f32.gmra.mxu0 %v320
    %v360 = vpop.f32.mrf.mxu0
    %v361 = vadd.f32 %v296, %v360
    %362 = vmatmul.f32.gmra.mxu0 %v323
    %v363 = vpop.f32.mrf.mxu0
    %v364 = vadd.f32 %v299, %v363
    %365 = vdwg.mxu0
    %v366 = vsub.f32 0.0, %v343
    %v367 = vsub.f32 0.0, %v346
    %v368 = vsub.f32 0.0, %v349
    %v369 = vsub.f32 0.0, %v352
    %v370 = vsub.f32 0.0, %v355
    %v371 = vsub.f32 0.0, %v358
    %v372 = vsub.f32 0.0, %v361
    %v373 = vsub.f32 0.0, %v364
    %v374 = vmul.f32 %v366, 1.442695
    %v375 = vpow.pop %v374
    %v376 = vmul.f32 %v367, 1.442695
    %v377 = vpow.pop %v376
    %v378 = vmul.f32 %v368, 1.442695
    %v379 = vpow.pop %v378
    %v380 = vmul.f32 %v369, 1.442695
    %v381 = vpow.pop %v380
    %v382 = vmul.f32 %v370, 1.442695
    %v383 = vpow.pop %v382
    %v384 = vmul.f32 %v371, 1.442695
    %v385 = vpow.pop %v384
    %v386 = vmul.f32 %v372, 1.442695
    %v387 = vpow.pop %v386
    %v388 = vmul.f32 %v373, 1.442695
    %v389 = vpow.pop %v388
    %v390 = vadd.f32 %v375, 1.0
    %v391 = vadd.f32 %v377, 1.0
    %v392 = vadd.f32 %v379, 1.0
    %v393 = vadd.f32 %v381, 1.0
    %v394 = vadd.f32 %v383, 1.0
    %v395 = vadd.f32 %v385, 1.0
    %v396 = vadd.f32 %v387, 1.0
    %v397 = vadd.f32 %v389, 1.0
    %v398 = vrcp.pop %v390
    %v399 = vrcp.pop %v391
    %v400 = vrcp.pop %v392
    %v401 = vrcp.pop %v393
    %v402 = vrcp.pop %v394
    %v403 = vrcp.pop %v395
    %v404 = vrcp.pop %v396
    %v405 = vrcp.pop %v397
    %v406 = vsub.f32 %v211, %v212
    %v407 = vsub.f32 %v213, %v214
    %v408 = vsub.f32 %v215, %v216
    %v409 = vsub.f32 %v217, %v218
    %v410 = vsub.f32 %v219, %v220
    %v411 = vsub.f32 %v221, %v222
    %v412 = vsub.f32 %v223, %v224
    %v413 = vsub.f32 %v225, %v226
    %v414 = vmul.f32 %v398, %v406
    %v415 = vmul.f32 %v399, %v407
    %v416 = vmul.f32 %v400, %v408
    %v417 = vmul.f32 %v401, %v409
    %v418 = vmul.f32 %v402, %v410
    %v419 = vmul.f32 %v403, %v411
    %v420 = vmul.f32 %v404, %v412
    %v421 = vmul.f32 %v405, %v413
    %v422 = vadd.f32 %v212, %v414
    %v423 = vadd.f32 %v214, %v415
    %v424 = vadd.f32 %v216, %v416
    %v425 = vadd.f32 %v218, %v417
    %v426 = vadd.f32 %v220, %v418
    %v427 = vadd.f32 %v222, %v419
    %v428 = vadd.f32 %v224, %v420
    %v429 = vadd.f32 %v226, %v421
    %v430 = vld [vmem:[#allocation7 + $0x18] sm:$0xff]
    %v431 = vld [vmem:[#allocation7 + $0x48] sm:$0xff]
    %v432 = vld [vmem:[#allocation7 + $0x78] sm:$0xff]
    %v433 = vld [vmem:[#allocation7 + $0xa8] sm:$0xff]
    %v434 = vld [vmem:[#allocation7 + $0xd8] sm:$0xff]
    %v435 = vld [vmem:[#allocation7 + $0x108] sm:$0xff]
    %v436 = vld [vmem:[#allocation7 + $0x138] sm:$0xff]
    %v437 = vld [vmem:[#allocation7 + $0x168] sm:$0xff]
    %v438 = vld [vmem:[#allocation7 + $0x198] sm:$0xff]
    %v439 = vld [vmem:[#allocation7 + $0x1c8] sm:$0xff]
    %v440 = vld [vmem:[#allocation7 + $0x1f8] sm:$0xff]
    %v441 = vld [vmem:[#allocation7 + $0x228] sm:$0xff]
    %v442 = vld [vmem:[#allocation7 + $0x258] sm:$0xff]
    %v443 = vld [vmem:[#allocation7 + $0x288] sm:$0xff]
    %v444 = vld [vmem:[#allocation7 + $0x2b8] sm:$0xff]
    %v445 = vld [vmem:[#allocation7 + $0x2e8] sm:$0xff]
    %446 = vmatpush.msra.mxu0 %v445
    %447 = vmatpush.msra.mxu0 %v444
    %448 = vmatpush.msra.mxu0 %v443
    %449 = vmatpush.msra.mxu0 %v442
    %450 = vmatpush.msra.mxu0 %v441
    %451 = vmatpush.msra.mxu0 %v440
    %452 = vmatpush.msra.mxu0 %v439
    %453 = vmatpush.msra.mxu0 %v438
    %454 = vmatpush.msra.mxu0 %v437
    %455 = vmatpush.msra.mxu0 %v436
    %456 = vmatpush.msra.mxu0 %v435
    %457 = vmatpush.msra.mxu0 %v434
    %458 = vmatpush.msra.mxu0 %v433
    %459 = vmatpush.msra.mxu0 %v432
    %460 = vmatpush.msra.mxu0 %v431
    %461 = vmatpush.msra.mxu0 %v430
    %462 = vmatmul.f32.gmra.mxu0 %v422
    %v463 = vpop.f32.mrf.mxu0
    %v464 = vadd.f32 0.0, %v463
    %465 = vmatmul.f32.gmra.mxu0 %v423
    %v466 = vpop.f32.mrf.mxu0
    %v467 = vadd.f32 0.0, %v466
    %468 = vmatmul.f32.gmra.mxu0 %v424
    %v469 = vpop.f32.mrf.mxu0
    %v470 = vadd.f32 0.0, %v469
    %471 = vmatmul.f32.gmra.mxu0 %v425
    %v472 = vpop.f32.mrf.mxu0
    %v473 = vadd.f32 0.0, %v472
    %474 = vmatmul.f32.gmra.mxu0 %v426
    %v475 = vpop.f32.mrf.mxu0
    %v476 = vadd.f32 0.0, %v475
    %477 = vmatmul.f32.gmra.mxu0 %v427
    %v478 = vpop.f32.mrf.mxu0
    %v479 = vadd.f32 0.0, %v478
    %480 = vmatmul.f32.gmra.mxu0 %v428
    %v481 = vpop.f32.mrf.mxu0
    %v482 = vadd.f32 0.0, %v481
    %483 = vmatmul.f32.gmra.mxu0 %v429
    %v484 = vpop.f32.mrf.mxu0
    %v485 = vadd.f32 0.0, %v484
    %486 = vdwg.mxu0
    %v487 = vld [vmem:[#allocation8] sm:$0xff]
    %v488 = vld [vmem:[#allocation8 + $0x18] sm:$0xff]
    %v489 = vld [vmem:[#allocation8 + $0x30] sm:$0xff]
    %v490 = vld [vmem:[#allocation8 + $0x48] sm:$0xff]
    %v491 = vld [vmem:[#allocation8 + $0x60] sm:$0xff]
    %v492 = vld [vmem:[#allocation8 + $0x78] sm:$0xff]
    %v493 = vld [vmem:[#allocation8 + $0x90] sm:$0xff]
    %v494 = vld [vmem:[#allocation8 + $0xa8] sm:$0xff]
    %vm495 = vcmask 523264
    %v497 = vsel %vm495, %v89, 0
    %v500 = vsel %vm495, %v90, 0
    %v503 = vsel %vm495, %v91, 0
    %v506 = vsel %vm495, %v92, 0
    %v509 = vsel %vm495, %v93, 0
    %v512 = vsel %vm495, %v94, 0
    %v515 = vsel %vm495, %v95, 0
    %v518 = vsel %vm495, %v96, 0
    %520 = vmatpush.msra.mxu0 0.0
    %521 = vmatpush.msra.mxu0 0.0
    %522 = vmatpush.msra.mxu0 0.0
    %523 = vmatpush.msra.mxu0 0.0
    %524 = vmatpush.msra.mxu0 0.0
    %525 = vmatpush.msra.mxu0 0.0
    %526 = vmatpush.msra.mxu0 0.0
    %527 = vmatpush.msra.mxu0 0.0
    %528 = vmatpush.msra.mxu0 %v485
    %529 = vmatpush.msra.mxu0 %v482
    %530 = vmatpush.msra.mxu0 %v479
    %531 = vmatpush.msra.mxu0 %v476
    %532 = vmatpush.msra.mxu0 %v473
    %533 = vmatpush.msra.mxu0 %v470
    %534 = vmatpush.msra.mxu0 %v467
    %535 = vmatpush.msra.mxu0 %v464
    %536 = vmatmul.f32.gmra.mxu0 %v497
    %v537 = vpop.f32.mrf.mxu0
    %v538 = vadd.f32 %v487, %v537
    %539 = vmatmul.f32.gmra.mxu0 %v500
    %v540 = vpop.f32.mrf.mxu0
    %v541 = vadd.f32 %v488, %v540
    %542 = vmatmul.f32.gmra.mxu0 %v503
    %v543 = vpop.f32.mrf.mxu0
    %v544 = vadd.f32 %v489, %v543
    %545 = vmatmul.f32.gmra.mxu0 %v506
    %v546 = vpop.f32.mrf.mxu0
    %v547 = vadd.f32 %v490, %v546
    %548 = vmatmul.f32.gmra.mxu0 %v509
    %v549 = vpop.f32.mrf.mxu0
    %v550 = vadd.f32 %v491, %v549
    %551 = vmatmul.f32.gmra.mxu0 %v512
    %v552 = vpop.f32.mrf.mxu0
    %v553 = vadd.f32 %v492, %v552
    %554 = vmatmul.f32.gmra.mxu0 %v515
    %v555 = vpop.f32.mrf.mxu0
    %v556 = vadd.f32 %v493, %v555
    %557 = vmatmul.f32.gmra.mxu0 %v518
    %v558 = vpop.f32.mrf.mxu0
    %v559 = vadd.f32 %v494, %v558
    %560 = vdwg.mxu0
    %v561 = vtanh.pop %v538
    %v562 = vtanh.pop %v541
    %v563 = vtanh.pop %v544
    %v564 = vtanh.pop %v547
    %v565 = vtanh.pop %v550
    %v566 = vtanh.pop %v553
    %v567 = vtanh.pop %v556
    %v568 = vtanh.pop %v559
    %v569 = vld [vmem:[#allocation7 + $0x20] sm:$0xff]
    %v570 = vld [vmem:[#allocation7 + $0x50] sm:$0xff]
    %v571 = vld [vmem:[#allocation7 + $0x80] sm:$0xff]
    %v572 = vld [vmem:[#allocation7 + $0xb0] sm:$0xff]
    %v574 = vsel %vm235, %v561, 0
    %v577 = vsel %vm235, %v562, 0
    %v580 = vsel %vm235, %v563, 0
    %v583 = vsel %vm235, %v564, 0
    %v586 = vsel %vm235, %v565, 0
    %v589 = vsel %vm235, %v566, 0
    %v592 = vsel %vm235, %v567, 0
    %v595 = vsel %vm235, %v568, 0
    %597 = vmatpush.msra.mxu0 0.0
    %598 = vmatpush.msra.mxu0 0.0
    %599 = vmatpush.msra.mxu0 0.0
    %600 = vmatpush.msra.mxu0 0.0
    %601 = vmatpush.msra.mxu0 0.0
    %602 = vmatpush.msra.mxu0 0.0
    %603 = vmatpush.msra.mxu0 0.0
    %604 = vmatpush.msra.mxu0 0.0
    %605 = vmatpush.msra.mxu0 0.0
    %606 = vmatpush.msra.mxu0 0.0
    %607 = vmatpush.msra.mxu0 0.0
    %608 = vmatpush.msra.mxu0 0.0
    %609 = vmatpush.msra.mxu0 %v572
    %610 = vmatpush.msra.mxu0 %v571
    %611 = vmatpush.msra.mxu0 %v570
    %612 = vmatpush.msra.mxu0 %v569
    %613 = vmatmul.f32.gmra.mxu0 %v574
    %v614 = vpop.f32.mrf.mxu0
    %v615 = vadd.f32 0.0, %v614
    %616 = vmatmul.f32.gmra.mxu0 %v577
    %v617 = vpop.f32.mrf.mxu0
    %v618 = vadd.f32 0.0, %v617
    %619 = vmatmul.f32.gmra.mxu0 %v580
    %v620 = vpop.f32.mrf.mxu0
    %v621 = vadd.f32 0.0, %v620
    %622 = vmatmul.f32.gmra.mxu0 %v583
    %v623 = vpop.f32.mrf.mxu0
    %v624 = vadd.f32 0.0, %v623
    %625 = vmatmul.f32.gmra.mxu0 %v586
    %v626 = vpop.f32.mrf.mxu0
    %v627 = vadd.f32 0.0, %v626
    %628 = vmatmul.f32.gmra.mxu0 %v589
    %v629 = vpop.f32.mrf.mxu0
    %v630 = vadd.f32 0.0, %v629
    %631 = vmatmul.f32.gmra.mxu0 %v592
    %v632 = vpop.f32.mrf.mxu0
    %v633 = vadd.f32 0.0, %v632
    %634 = vmatmul.f32.gmra.mxu0 %v595
    %v635 = vpop.f32.mrf.mxu0
    %v636 = vadd.f32 0.0, %v635
    %637 = vdwg.mxu0
    %v638 = vld [vmem:[#allocation8 + $0x8] sm:$0xff]
    %v639 = vld [vmem:[#allocation8 + $0x20] sm:$0xff]
    %v640 = vld [vmem:[#allocation8 + $0x38] sm:$0xff]
    %v641 = vld [vmem:[#allocation8 + $0x50] sm:$0xff]
    %v642 = vld [vmem:[#allocation8 + $0x68] sm:$0xff]
    %v643 = vld [vmem:[#allocation8 + $0x80] sm:$0xff]
    %v644 = vld [vmem:[#allocation8 + $0x98] sm:$0xff]
    %v645 = vld [vmem:[#allocation8 + $0xb0] sm:$0xff]
    %646 = vmatpush.msra.mxu0 0.0
    %647 = vmatpush.msra.mxu0 0.0
    %648 = vmatpush.msra.mxu0 0.0
    %649 = vmatpush.msra.mxu0 0.0
    %650 = vmatpush.msra.mxu0 0.0
    %651 = vmatpush.msra.mxu0 0.0
    %652 = vmatpush.msra.mxu0 0.0
    %653 = vmatpush.msra.mxu0 0.0
    %654 = vmatpush.msra.mxu0 %v636
    %655 = vmatpush.msra.mxu0 %v633
    %656 = vmatpush.msra.mxu0 %v630
    %657 = vmatpush.msra.mxu0 %v627
    %658 = vmatpush.msra.mxu0 %v624
    %659 = vmatpush.msra.mxu0 %v621
    %660 = vmatpush.msra.mxu0 %v618
    %661 = vmatpush.msra.mxu0 %v615
    %662 = vmatmul.f32.gmra.mxu0 %v497
    %v663 = vpop.f32.mrf.mxu0
    %v664 = vadd.f32 %v638, %v663
    %665 = vmatmul.f32.gmra.mxu0 %v500
    %v666 = vpop.f32.mrf.mxu0
    %v667 = vadd.f32 %v639, %v666
    %668 = vmatmul.f32.gmra.mxu0 %v503
    %v669 = vpop.f32.mrf.mxu0
    %v670 = vadd.f32 %v640, %v669
    %671 = vmatmul.f32.gmra.mxu0 %v506
    %v672 = vpop.f32.mrf.mxu0
    %v673 = vadd.f32 %v641, %v672
    %674 = vmatmul.f32.gmra.mxu0 %v509
    %v675 = vpop.f32.mrf.mxu0
    %v676 = vadd.f32 %v642, %v675
    %677 = vmatmul.f32.gmra.mxu0 %v512
    %v678 = vpop.f32.mrf.mxu0
    %v679 = vadd.f32 %v643, %v678
    %680 = vmatmul.f32.gmra.mxu0 %v515
    %v681 = vpop.f32.mrf.mxu0
    %v682 = vadd.f32 %v644, %v681
    %683 = vmatmul.f32.gmra.mxu0 %v518
    %v684 = vpop.f32.mrf.mxu0
    %v685 = vadd.f32 %v645, %v684
    %686 = vdwg.mxu0
    %v687 = vtanh.pop %v664
    %v688 = vtanh.pop %v667
    %v689 = vtanh.pop %v670
    %v690 = vtanh.pop %v673
    %v691 = vtanh.pop %v676
    %v692 = vtanh.pop %v679
    %v693 = vtanh.pop %v682
    %v694 = vtanh.pop %v685
    %v695 = vld [vmem:[#allocation7 + $0x28] sm:$0xff]
    %v696 = vld [vmem:[#allocation7 + $0x58] sm:$0xff]
    %v697 = vld [vmem:[#allocation7 + $0x88] sm:$0xff]
    %v698 = vld [vmem:[#allocation7 + $0xb8] sm:$0xff]
    %v699 = vld [vmem:[#allocation8 + $0x10] sm:$0xff]
    %v700 = vld [vmem:[#allocation8 + $0x28] sm:$0xff]
    %v701 = vld [vmem:[#allocation8 + $0x40] sm:$0xff]
    %v702 = vld [vmem:[#allocation8 + $0x58] sm:$0xff]
    %v703 = vld [vmem:[#allocation8 + $0x70] sm:$0xff]
    %v704 = vld [vmem:[#allocation8 + $0x88] sm:$0xff]
    %v705 = vld [vmem:[#allocation8 + $0xa0] sm:$0xff]
    %v706 = vld [vmem:[#allocation8 + $0xb8] sm:$0xff]
    %v708 = vsel %vm235, %v687, 0
    %v711 = vsel %vm235, %v688, 0
    %v714 = vsel %vm235, %v689, 0
    %v717 = vsel %vm235, %v690, 0
    %v720 = vsel %vm235, %v691, 0
    %v723 = vsel %vm235, %v692, 0
    %v726 = vsel %vm235, %v693, 0
    %v729 = vsel %vm235, %v694, 0
    %731 = vmatpush.msra.mxu0 0.0
    %732 = vmatpush.msra.mxu0 0.0
    %733 = vmatpush.msra.mxu0 0.0
    %734 = vmatpush.msra.mxu0 0.0
    %735 = vmatpush.msra.mxu0 0.0
    %736 = vmatpush.msra.mxu0 0.0
    %737 = vmatpush.msra.mxu0 0.0
    %738 = vmatpush.msra.mxu0 0.0
    %739 = vmatpush.msra.mxu0 0.0
    %740 = vmatpush.msra.mxu0 0.0
    %741 = vmatpush.msra.mxu0 0.0
    %742 = vmatpush.msra.mxu0 0.0
    %743 = vmatpush.msra.mxu0 %v698
    %744 = vmatpush.msra.mxu0 %v697
    %745 = vmatpush.msra.mxu0 %v696
    %746 = vmatpush.msra.mxu0 %v695
    %747 = vmatmul.f32.gmra.mxu0 %v708
    %v748 = vpop.f32.mrf.mxu0
    %v749 = vadd.f32 %v699, %v748
    %750 = vmatmul.f32.gmra.mxu0 %v711
    %v751 = vpop.f32.mrf.mxu0
    %v752 = vadd.f32 %v700, %v751
    %753 = vmatmul.f32.gmra.mxu0 %v714
    %v754 = vpop.f32.mrf.mxu0
    %v755 = vadd.f32 %v701, %v754
    %756 = vmatmul.f32.gmra.mxu0 %v717
    %v757 = vpop.f32.mrf.mxu0
    %v758 = vadd.f32 %v702, %v757
    %759 = vmatmul.f32.gmra.mxu0 %v720
    %v760 = vpop.f32.mrf.mxu0
    %v761 = vadd.f32 %v703, %v760
    %762 = vmatmul.f32.gmra.mxu0 %v723
    %v763 = vpop.f32.mrf.mxu0
    %v764 = vadd.f32 %v704, %v763
    %765 = vmatmul.f32.gmra.mxu0 %v726
    %v766 = vpop.f32.mrf.mxu0
    %v767 = vadd.f32 %v705, %v766
    %768 = vmatmul.f32.gmra.mxu0 %v729
    %v769 = vpop.f32.mrf.mxu0
    %v770 = vadd.f32 %v706, %v769
    %771 = vdwg.mxu0
    %772 = vmax.xlane.f32.xlu0 %v749
    %v773 = vpop.xlane.xlu0 %772
    %774 = vmax.xlane.f32.xlu0 %v752
    %v775 = vpop.xlane.xlu0 %774
    %776 = vmax.xlane.f32.xlu0 %v755
    %v777 = vpop.xlane.xlu0 %776
    %778 = vmax.xlane.f32.xlu0 %v758
    %v779 = vpop.xlane.xlu0 %778
    %780 = vmax.xlane.f32.xlu0 %v761
    %v781 = vpop.xlane.xlu0 %780
    %782 = vmax.xlane.f32.xlu0 %v764
    %v783 = vpop.xlane.xlu0 %782
    %784 = vmax.xlane.f32.xlu0 %v767
    %v785 = vpop.xlane.xlu0 %784
    %786 = vmax.xlane.f32.xlu0 %v770
    %v787 = vpop.xlane.xlu0 %786
    %v788 = vsub.f32 %v749, %v773
    %v789 = vsub.f32 %v752, %v775
    %v790 = vsub.f32 %v755, %v777
    %v791 = vsub.f32 %v758, %v779
    %v792 = vsub.f32 %v761, %v781
    %v793 = vsub.f32 %v764, %v783
    %v794 = vsub.f32 %v767, %v785
    %v795 = vsub.f32 %v770, %v787
    %v796 = vmul.f32 %v788, 1.442695
    %v797 = vpow.pop %v796
    %v798 = vmul.f32 %v789, 1.442695
    %v799 = vpow.pop %v798
    %v800 = vmul.f32 %v790, 1.442695
    %v801 = vpow.pop %v800
    %v802 = vmul.f32 %v791, 1.442695
    %v803 = vpow.pop %v802
    %v804 = vmul.f32 %v792, 1.442695
    %v805 = vpow.pop %v804
    %v806 = vmul.f32 %v793, 1.442695
    %v807 = vpow.pop %v806
    %v808 = vmul.f32 %v794, 1.442695
    %v809 = vpow.pop %v808
    %v810 = vmul.f32 %v795, 1.442695
    %v811 = vpow.pop %v810
    %812 = vadd.xlane.f32.xlu0 %v797
    %v813 = vpop.xlane.xlu0 %812
    %814 = vadd.xlane.f32.xlu0 %v799
    %v815 = vpop.xlane.xlu0 %814
    %816 = vadd.xlane.f32.xlu0 %v801
    %v817 = vpop.xlane.xlu0 %816
    %818 = vadd.xlane.f32.xlu0 %v803
    %v819 = vpop.xlane.xlu0 %818
    %820 = vadd.xlane.f32.xlu0 %v805
    %v821 = vpop.xlane.xlu0 %820
    %822 = vadd.xlane.f32.xlu0 %v807
    %v823 = vpop.xlane.xlu0 %822
    %824 = vadd.xlane.f32.xlu0 %v809
    %v825 = vpop.xlane.xlu0 %824
    %826 = vadd.xlane.f32.xlu0 %v811
    %v827 = vpop.xlane.xlu0 %826
    %v828 = vlog2.pop %v813
    %v829 = vmul.f32 %v828, 0.6931472
    %v830 = vlog2.pop %v815
    %v831 = vmul.f32 %v830, 0.6931472
    %v832 = vlog2.pop %v817
    %v833 = vmul.f32 %v832, 0.6931472
    %v834 = vlog2.pop %v819
    %v835 = vmul.f32 %v834, 0.6931472
    %v836 = vlog2.pop %v821
    %v837 = vmul.f32 %v836, 0.6931472
    %v838 = vlog2.pop %v823
    %v839 = vmul.f32 %v838, 0.6931472
    %v840 = vlog2.pop %v825
    %v841 = vmul.f32 %v840, 0.6931472
    %v842 = vlog2.pop %v827
    %v843 = vmul.f32 %v842, 0.6931472
    %v844 = vadd.f32 %v829, %v773
    %v845 = vadd.f32 %v831, %v775
    %v846 = vadd.f32 %v833, %v777
    %v847 = vadd.f32 %v835, %v779
    %v848 = vadd.f32 %v837, %v781
    %v849 = vadd.f32 %v839, %v783
    %v850 = vadd.f32 %v841, %v785
    %v851 = vadd.f32 %v843, %v787
    %v852 = vsub.f32 %v749, %v844
    %v853 = vsub.f32 %v752, %v845
    %v854 = vsub.f32 %v755, %v846
    %v855 = vsub.f32 %v758, %v847
    %v856 = vsub.f32 %v761, %v848
    %v857 = vsub.f32 %v764, %v849
    %v858 = vsub.f32 %v767, %v850
    %v859 = vsub.f32 %v770, %v851
    %860 = vst [vmem:[#allocation10] sm:$0xff] %v852
    %861 = vst [vmem:[#allocation10 + $0x8] sm:$0xff] %v853
    %862 = vst [vmem:[#allocation10 + $0x10] sm:$0xff] %v854
    %863 = vst [vmem:[#allocation10 + $0x18] sm:$0xff] %v855
    %864 = vst [vmem:[#allocation10 + $0x20] sm:$0xff] %v856
    %865 = vst [vmem:[#allocation10 + $0x28] sm:$0xff] %v857
    %866 = vst [vmem:[#allocation10 + $0x30] sm:$0xff] %v858
    %867 = vst [vmem:[#allocation10 + $0x38] sm:$0xff] %v859
    // Predicated region
    $region34: #{tpu_custom_call.1} parent=1 // pred_check
      _
    $region35: #{tpu_custom_call.1} parent=1 // pred_check_branch
      %869 = sbr.rel (0) target = $region37
    $region36: #{tpu_custom_call.1} parent=1 // pred_region
      %871 = vsyncadd [#allocation4], 0
      %s872 = sshll.u32 [#allocation10], 4
      %s873 = int_to_ptr.vmem [resolvable:$true] %s872
      %s874 = sshll.u32 %s4, 4
      %s875 = int_to_ptr.hbm [resolvable:$true] %s874
      %880 = dma.vmem_to_hbm [thread:$0]  %s873, 1024, %s875, [#allocation4], 128, 128, 8
    $region37: #{tpu_custom_call.1} parent=1 // pred_fallthru
      _
    // Predicated region
    $region38: #{tpu_custom_call.1} parent=1 // pred_check
      _
    $region39: #{tpu_custom_call.1} parent=1 // pred_check_branch
      %882 = sbr.rel (0) target = $region41
    $region40: #{tpu_custom_call.1} parent=1 // pred_region
      %884 = dma.done [#allocation4], 1024
    $region41: #{tpu_custom_call.1} parent=1 // pred_fallthru
      _
    %885 = vsyncpa [#allocation3], 1
    %886 = vsyncpa [#allocation6], 1
    %887 = vsyncpa [#allocation9], 1
    %888 = vsyncpa [#allocation4], 1

</llo_original>
